<compile_context>
chip_gen: v6e
topology: v6e:2x2x1
jax: 0.10.0
libtpu: 0.0.40
codegen_flags: <defaults>
</compile_context>

<pallas_src>
import jax
import jax.numpy as jnp
from jax.experimental import pallas as pl
from jax.experimental.pallas import tpu as pltpu

LANES = 128          # lane width of every slab row
NPAD = 128           # matched-pair lane padding (== LANES so the pairs rows stack onto the slab)
_LOG_EPS = -13.815510557964274   # log(1e-6), the reference's clamp floor


def _make_kernel(R: int, bq: int):
    """Build the fused kernel for a given dense-row count R and true length bq."""
    pad = R * LANES - bq
    inv_n = 1.0 / float(bq)

    def kernel(slab_ref, out_ref):
        # ------- dense pass over all B*Q positions with target t = 0 -------
        x = slab_ref[pl.ds(0, R), :]          # logits  (R, 128) f32
        m = slab_ref[pl.ds(R, R), :]          # gaussian maps

        e = jnp.exp(-jnp.abs(x))                          # EUP exp (shared)
        sp = jnp.log(1.0 + e)                             # softplus(-|x|) (shared log)
        r = pl.reciprocal(1.0 + e, approx=True)           # ~free EUP slot
        p = jnp.where(x >= 0.0, r, 1.0 - r)               # sigmoid(x), overflow-safe
        log_p = jnp.minimum(x, 0.0) - sp                  # log(sigmoid(x)), exact
        log_1p = -jnp.maximum(x, 0.0) - sp                # log(1 - sigmoid(x)), exact
        bce0 = jnp.maximum(x, 0.0) + sp                   # BCE-with-logits at t = 0

        p2 = p * p
        qfl_elem = bce0 * p2                  # qfocal elementwise at t=0; vari base = 0.85 * this

        # gaussian_map_loss (beta=4, alpha=2, sigmoid=True) — clamps as in the reference
        one = m == 1.0                                     # exact maps.eq(1.0)
        pc = jnp.clip(p, 1e-6, 1.0)
        log_pc = jnp.clip(log_p, _LOG_EPS, 0.0)            # == log(clamp(p, 1e-6, 1))
        log_p1c = jnp.clip(log_1p, _LOG_EPS, 0.0)          # == log(clamp(1-p, 1e-6, 1))
        om = 1.0 - m
        om2 = om * om
        neg_elem = jnp.where(one, 0.0, om2 * om2 * (pc * pc) * log_p1c)
        onem = 1.0 - pc
        ones_elem = jnp.where(one, onem * onem * log_pc, 0.0)
        one_f = jnp.where(one, 1.0, 0.0)

        if pad:  # only traced when B*Q is not a multiple of 128
            rows = jax.lax.broadcasted_iota(jnp.int32, (R, LANES), 0)
            cols = jax.lax.broadcasted_iota(jnp.int32, (R, LANES), 1)
            valid_d = (rows * LANES + cols) < bq
            qfl_elem = jnp.where(valid_d, qfl_elem, 0.0)
            neg_elem = jnp.where(valid_d, neg_elem, 0.0)
            ones_elem = jnp.where(valid_d, ones_elem, 0.0)
            one_f = jnp.where(valid_d, one_f, 0.0)

        # ------- matched-pair correction (O(NPAD); replaces the one-hot) ----
        pb = slab_ref[pl.ds(2 * R, 10), :]                 # (10, 128)
        scx, scy, sw, sh = pb[0:1, :], pb[1:2, :], pb[2:3, :], pb[3:4, :]
        tcx, tcy, tw, th = pb[4:5, :], pb[5:6, :], pb[6:7, :], pb[7:8, :]
        xm = pb[8:9, :]                                    # matched logits
        valid = pb[9:10, :]                                # 1 real / 0 padding

        # caliou(cxcyToxyxy(src), cxcyToxyxy(tgt))
        sx1 = scx - 0.5 * sw
        sy1 = scy - 0.5 * sh
        sx2 = sx1 + sw
        sy2 = sy1 + sh
        tx1 = tcx - 0.5 * tw
        ty1 = tcy - 0.5 * th
        tx2 = tx1 + tw
        ty2 = ty1 + th
        iw = jnp.maximum(jnp.minimum(sx2, tx2) - jnp.maximum(sx1, tx1), 0.0)
        ih = jnp.maximum(jnp.minimum(sy2, ty2) - jnp.maximum(sy1, ty1), 0.0)
        inter = iw * ih
        union = (sx2 - sx1) * (sy2 - sy1) + (tx2 - tx1) * (ty2 - ty1) - inter
        iou = inter / jnp.maximum(union, 1e-12)            # eps guard: degenerate pairs -> 0, not NaN
        t = iou * valid                                    # padded lanes -> t = 0 -> correction == 0

        e_m = jnp.exp(-jnp.abs(xm))
        sp_m = jnp.log(1.0 + e_m)
        r_m = pl.reciprocal(1.0 + e_m, approx=True)
        p_m = jnp.where(xm >= 0.0, r_m, 1.0 - r_m)
        bce0_m = jnp.maximum(xm, 0.0) + sp_m               # exactly what the dense pass counted here
        bce_t = bce0_m - xm * t                            # BCE-with-logits at target t
        pm2 = p_m * p_m
        pos = t > 0.0
        dmt = p_m - t
        # varifocal (alpha=0.85, gamma=2): fw = t for t>0, 0.85*p^2 for t<=0 (== base)
        vari_corr = jnp.where(pos, bce_t * t - bce0_m * (0.85 * pm2), 0.0)
        # qfocal (beta=2): fw = (p - t)^2; base is p^2
        qfl_corr = jnp.where(pos, bce_t * (dmt * dmt) - bce0_m * pm2, 0.0)

        # ------- reductions (each over <= (R,128), a few vregs) -------------
        qfl_base_sum = jnp.sum(qfl_elem)
        neg_sum = jnp.sum(neg_elem)
        ones_sum = jnp.sum(ones_elem)
        cnt = jnp.sum(one_f)
        vari_corr_sum = jnp.sum(vari_corr)
        qfl_corr_sum = jnp.sum(qfl_corr)

        out_ref[0] = (0.85 * qfl_base_sum + vari_corr_sum) * inv_n      # loss_vari mean
        out_ref[1] = (qfl_base_sum + qfl_corr_sum) * inv_n              # loss_qfl mean
        # max(cnt, 1) guards the no-positive case (NaN in the PyTorch reference)
        out_ref[2] = -(neg_sum * inv_n + ones_sum / jnp.maximum(cnt, 1.0))

    return kernel


def _run_fused(slab, R, bq):
    # Gridless: the whole slab is ~8 bytes per map element, so it fits default
    # scoped VMEM up to B*Q in the millions.  For larger maps, tile the dense
    # rows with a grid over the sublane axis (parallel) and reduce partials.
    return pl.pallas_call(
        _make_kernel(R, bq),
        out_shape=jax.ShapeDtypeStruct((3,), jnp.float32),
        in_specs=[pl.BlockSpec(memory_space=pltpu.MemorySpace.VMEM)],
        out_specs=pl.BlockSpec(memory_space=pltpu.MemorySpace.SMEM),
    )(slab)


class SetCriterion:
    """JAX/Pallas port of lossutil.util.SetCriterion (forward path)."""

    def __init__(self, num_classes, matcher, weight_dict, eos_coef, losses):
        self.num_classes = num_classes
        self.matcher = matcher
        self.weight_dict = weight_dict
        self.eos_coef = eos_coef
        self.losses = losses
        # deterministic buffer init (consumed only by the 'labels' CE loss)
        self.empty_weight = jnp.ones((num_classes + 1,), jnp.float32).at[-1].set(eos_coef)

    def set_vari(self):
        self.losses = ['boxes', 'vari']

    def set_ce(self):
        self.losses = ['gloss']

    def __call__(self, outputs, targets, bboxs=None, indices=None, gassian_maps=None):
        # num_boxes_pos (unused by vari / gloss / qfl, kept for fidelity)
        num_boxes_pos = max(sum(int(src.shape[0]) for src, _ in indices), 1)
        del num_boxes_pos

        pred_logits = outputs['pred_logits']
        pred_boxes = outputs['pred_boxes']
        B, Q, _ = pred_logits.shape
        bq = B * Q
        R = -(-bq // LANES)
        pad = R * LANES - bq

        # ---- dense rows: logits then maps, sublane-dense (R, 128) each -----
        logits_flat = pred_logits[:, :, 0].reshape(-1).astype(jnp.float32)
        maps_flat = gassian_maps.reshape(-1).astype(jnp.float32)
        if pad:
            logits_flat = jnp.pad(logits_flat, (0, pad))
            maps_flat = jnp.pad(maps_flat, (0, pad))
        dense = jnp.concatenate([logits_flat, maps_flat]).reshape(2 * R, LANES)

        # ---- matched-pair block (10, 128): tiny host-side gather glue ------
        batch_idx = jnp.concatenate(
            [jnp.full(src.shape, i, jnp.int32) for i, (src, _) in enumerate(indices)])
        src_idx = jnp.concatenate([src for src, _ in indices]).astype(jnp.int32)
        n = int(src_idx.shape[0])
        assert n <= NPAD, f'too many matched pairs ({n} > {NPAD})'
        pad_n = NPAD - n

        src_boxes = pred_boxes[batch_idx, src_idx].astype(jnp.float32)        # (n, 4)
        tgt_boxes = jnp.concatenate(
            [t['boxes'][tgt] for t, (_, tgt) in zip(targets, indices)],
            axis=0).astype(jnp.float32)                                       # (n, 4)
        matched_logits = pred_logits[batch_idx, src_idx, 0].astype(jnp.float32)

        pad_box = jnp.full((pad_n, 4), 0.5, jnp.float32)   # unit-overlap pads (never NaN)
        src_rows = jnp.concatenate([src_boxes, pad_box], axis=0).T            # (4, 128)
        tgt_rows = jnp.concatenate([tgt_boxes, pad_box], axis=0).T            # (4, 128)
        xm_row = jnp.concatenate(
            [matched_logits, jnp.zeros((pad_n,), jnp.float32)])[None, :]      # (1, 128)
        valid_row = jnp.concatenate(
            [jnp.ones((n,), jnp.float32), jnp.zeros((pad_n,), jnp.float32)])[None, :]
        pairs = jnp.concatenate([src_rows, tgt_rows, xm_row, valid_row], axis=0)

        # Single packed slab -> one HBM->VMEM DMA for the whole kernel.
        slab = jnp.concatenate([dense, pairs], axis=0)                        # (2R+10, 128)

        out = _run_fused(slab, R, bq)
        vari_mean, qfl_mean, gloss = out[0], out[1], out[2]

        losses = {}
        for loss in self.losses:
            if loss == 'vari':
                # TODO(synk): the optional 'pred_weights' softmax/L1 branch is not wired.
                losses.update({'varifocal': vari_mean, 'weight': 0})
            elif loss == 'gloss':
                # NB: shares the 'varifocal' key with 'vari' — dict.update order
                # semantics are preserved exactly as in the PyTorch module.
                losses.update({'varifocal': gloss})
            elif loss == 'qfl':
                losses.update({'qfl': qfl_mean})
            else:
                # TODO(synk): 'boxes' needs box_ops.bbox_alpha_iou (not provided);
                # 'labels' (weighted CE against empty_weight) is not wired here.
                raise NotImplementedError(f'loss {loss} not implemented in Pallas port')
        return losses


if __name__ == "__main__":
    key = jax.random.PRNGKey(0)
    B, Q = 2, 256
    n_match, n_tgt = 4, 6

    k1, k2, k3, k4 = jax.random.split(key, 4)
    pred_logits = jax.random.normal(k1, (B, Q, 1), dtype=jnp.float32)
    pred_boxes = jax.nn.sigmoid(jax.random.normal(k2, (B, Q, 4), dtype=jnp.float32))

    targets, indices = [], []
    for b in range(B):
        kb1, kb2, kb3, k3 = jax.random.split(k3, 4)
        cxcy = jax.random.uniform(kb1, (n_tgt, 2), minval=0.3, maxval=0.7)
        wh = jax.random.uniform(kb2, (n_tgt, 2), minval=0.2, maxval=0.5)
        targets.append({'boxes': jnp.concatenate([cxcy, wh], axis=-1).astype(jnp.float32),
                        'labels': jnp.zeros((n_tgt,), jnp.int32)})
        src = jax.random.permutation(kb3, Q)[:n_match].astype(jnp.int32)
        tgt = jnp.arange(n_match, dtype=jnp.int32)
        indices.append((src, tgt))

    maps = jax.random.uniform(k4, (B, Q), minval=0.0, maxval=0.9).astype(jnp.float32)
    batch_idx = jnp.concatenate([jnp.full((n_match,), i, jnp.int32) for i in range(B)])
    src_all = jnp.concatenate([s for s, _ in indices])
    maps = maps.at[batch_idx, src_all].set(1.0)   # guarantee positives for gaussian loss

    criterion = SetCriterion(num_classes=1, matcher=None,
                             weight_dict={'varifocal': 1.0, 'qfl': 1.0},
                             eos_coef=0.0625,
                             losses=['gloss', 'vari', 'qfl'])
    outputs = {'pred_logits': pred_logits, 'pred_boxes': pred_boxes}

    result = criterion(outputs, targets, indices=indices, gassian_maps=maps)
    for v in result.values():
        if isinstance(v, jax.Array):
            jax.block_until_ready(v)
    print("KERNEL_OK")
</pallas_src>

<mosaic_0001>
module attributes {stable_mosaic.version = 11 : i64} {
  func.func @kernel(%arg0: memref<18x128xf32, #tpu.memory_space<vmem>>, %arg1: memref<3xf32, #tpu.memory_space<smem>>) attributes {dimension_semantics = [], scalar_prefetch = 0 : i64, scratch_operands = 0 : i64, tpu.core_type = #tpu.core_type<tc>} {
    %c0 = arith.constant 0 : index
    %c0_0 = arith.constant 0 : index
    %0 = vector.load %arg0[%c0, %c0_0] : memref<18x128xf32, #tpu.memory_space<vmem>>, vector<4x128xf32>
    %c4 = arith.constant 4 : index
    %c0_1 = arith.constant 0 : index
    %1 = vector.load %arg0[%c4, %c0_1] : memref<18x128xf32, #tpu.memory_space<vmem>>, vector<4x128xf32>
    %2 = math.absf %0 : vector<4x128xf32>
    %cst = arith.constant 0.000000e+00 : f32
    %3 = vector.broadcast %cst : f32 to vector<4x128xf32>
    %4 = arith.subf %3, %2 : vector<4x128xf32>
    %5 = math.exp %4 : vector<4x128xf32>
    %cst_2 = arith.constant 1.000000e+00 : f32
    %6 = vector.broadcast %cst_2 : f32 to vector<4x128xf32>
    %7 = arith.addf %6, %5 : vector<4x128xf32>
    %8 = math.log %7 : vector<4x128xf32>
    %cst_3 = arith.constant 1.000000e+00 : f32
    %9 = vector.broadcast %cst_3 : f32 to vector<4x128xf32>
    %10 = arith.addf %9, %5 : vector<4x128xf32>
    %11 = tpu.reciprocal %10 {approx = true} : vector<4x128xf32> -> vector<4x128xf32>
    %cst_4 = arith.constant 0.000000e+00 : f32
    %12 = vector.broadcast %cst_4 : f32 to vector<4x128xf32>
    %13 = arith.cmpf oge, %0, %12 : vector<4x128xf32>
    %cst_5 = arith.constant 1.000000e+00 : f32
    %14 = vector.broadcast %cst_5 : f32 to vector<4x128xf32>
    %15 = arith.subf %14, %11 : vector<4x128xf32>
    %16 = arith.select %13, %11, %15 : vector<4x128xi1>, vector<4x128xf32>
    %cst_6 = arith.constant 0.000000e+00 : f32
    %17 = vector.broadcast %cst_6 : f32 to vector<4x128xf32>
    %18 = arith.minimumf %0, %17 : vector<4x128xf32>
    %19 = arith.subf %18, %8 : vector<4x128xf32>
    %cst_7 = arith.constant 0.000000e+00 : f32
    %20 = vector.broadcast %cst_7 : f32 to vector<4x128xf32>
    %21 = arith.maximumf %0, %20 : vector<4x128xf32>
    %cst_8 = arith.constant 0.000000e+00 : f32
    %22 = vector.broadcast %cst_8 : f32 to vector<4x128xf32>
    %23 = arith.subf %22, %21 : vector<4x128xf32>
    %24 = arith.subf %23, %8 : vector<4x128xf32>
    %cst_9 = arith.constant 0.000000e+00 : f32
    %25 = vector.broadcast %cst_9 : f32 to vector<4x128xf32>
    %26 = arith.maximumf %0, %25 : vector<4x128xf32>
    %27 = arith.addf %26, %8 : vector<4x128xf32>
    %28 = arith.mulf %16, %16 : vector<4x128xf32>
    %29 = arith.mulf %27, %28 : vector<4x128xf32>
    %cst_10 = arith.constant 1.000000e+00 : f32
    %30 = vector.broadcast %cst_10 : f32 to vector<4x128xf32>
    %31 = arith.cmpf oeq, %1, %30 : vector<4x128xf32>
    %cst_11 = arith.constant 9.99999997E-7 : f32
    %cst_12 = arith.constant 1.000000e+00 : f32
    %32 = vector.broadcast %cst_11 : f32 to vector<4x128xf32>
    %33 = arith.maximumf %32, %16 : vector<4x128xf32>
    %34 = vector.broadcast %cst_12 : f32 to vector<4x128xf32>
    %35 = arith.minimumf %34, %33 : vector<4x128xf32>
    %cst_13 = arith.constant -13.8155107 : f32
    %cst_14 = arith.constant 0.000000e+00 : f32
    %36 = vector.broadcast %cst_13 : f32 to vector<4x128xf32>
    %37 = arith.maximumf %36, %19 : vector<4x128xf32>
    %38 = vector.broadcast %cst_14 : f32 to vector<4x128xf32>
    %39 = arith.minimumf %38, %37 : vector<4x128xf32>
    %cst_15 = arith.constant -13.8155107 : f32
    %cst_16 = arith.constant 0.000000e+00 : f32
    %40 = vector.broadcast %cst_15 : f32 to vector<4x128xf32>
    %41 = arith.maximumf %40, %24 : vector<4x128xf32>
    %42 = vector.broadcast %cst_16 : f32 to vector<4x128xf32>
    %43 = arith.minimumf %42, %41 : vector<4x128xf32>
    %cst_17 = arith.constant 1.000000e+00 : f32
    %44 = vector.broadcast %cst_17 : f32 to vector<4x128xf32>
    %45 = arith.subf %44, %1 : vector<4x128xf32>
    %46 = arith.mulf %45, %45 : vector<4x128xf32>
    %47 = arith.mulf %46, %46 : vector<4x128xf32>
    %48 = arith.mulf %35, %35 : vector<4x128xf32>
    %49 = arith.mulf %47, %48 : vector<4x128xf32>
    %50 = arith.mulf %49, %43 : vector<4x128xf32>
    %cst_18 = arith.constant 0.000000e+00 : f32
    %51 = vector.broadcast %cst_18 : f32 to vector<4x128xf32>
    %52 = arith.select %31, %51, %50 : vector<4x128xi1>, vector<4x128xf32>
    %cst_19 = arith.constant 1.000000e+00 : f32
    %53 = vector.broadcast %cst_19 : f32 to vector<4x128xf32>
    %54 = arith.subf %53, %35 : vector<4x128xf32>
    %55 = arith.mulf %54, %54 : vector<4x128xf32>
    %56 = arith.mulf %55, %39 : vector<4x128xf32>
    %cst_20 = arith.constant 0.000000e+00 : f32
    %57 = vector.broadcast %cst_20 : f32 to vector<4x128xf32>
    %58 = arith.select %31, %56, %57 : vector<4x128xi1>, vector<4x128xf32>
    %cst_21 = arith.constant 1.000000e+00 : f32
    %cst_22 = arith.constant 0.000000e+00 : f32
    %59 = vector.broadcast %cst_21 : f32 to vector<4x128xf32>
    %60 = vector.broadcast %cst_22 : f32 to vector<4x128xf32>
    %61 = arith.select %31, %59, %60 : vector<4x128xi1>, vector<4x128xf32>
    %c8 = arith.constant 8 : index
    %c0_23 = arith.constant 0 : index
    %62 = vector.load %arg0[%c8, %c0_23] : memref<18x128xf32, #tpu.memory_space<vmem>>, vector<10x128xf32>
    %63 = vector.extract_strided_slice %62 {offsets = [0, 0], sizes = [1, 128], strides = [1, 1]} : vector<10x128xf32> to vector<1x128xf32>
    %64 = vector.extract_strided_slice %62 {offsets = [1, 0], sizes = [1, 128], strides = [1, 1]} : vector<10x128xf32> to vector<1x128xf32>
    %65 = vector.extract_strided_slice %62 {offsets = [2, 0], sizes = [1, 128], strides = [1, 1]} : vector<10x128xf32> to vector<1x128xf32>
    %66 = vector.extract_strided_slice %62 {offsets = [3, 0], sizes = [1, 128], strides = [1, 1]} : vector<10x128xf32> to vector<1x128xf32>
    %67 = vector.extract_strided_slice %62 {offsets = [4, 0], sizes = [1, 128], strides = [1, 1]} : vector<10x128xf32> to vector<1x128xf32>
    %68 = vector.extract_strided_slice %62 {offsets = [5, 0], sizes = [1, 128], strides = [1, 1]} : vector<10x128xf32> to vector<1x128xf32>
    %69 = vector.extract_strided_slice %62 {offsets = [6, 0], sizes = [1, 128], strides = [1, 1]} : vector<10x128xf32> to vector<1x128xf32>
    %70 = vector.extract_strided_slice %62 {offsets = [7, 0], sizes = [1, 128], strides = [1, 1]} : vector<10x128xf32> to vector<1x128xf32>
    %71 = vector.extract_strided_slice %62 {offsets = [8, 0], sizes = [1, 128], strides = [1, 1]} : vector<10x128xf32> to vector<1x128xf32>
    %72 = vector.extract_strided_slice %62 {offsets = [9, 0], sizes = [1, 128], strides = [1, 1]} : vector<10x128xf32> to vector<1x128xf32>
    %cst_24 = arith.constant 5.000000e-01 : f32
    %73 = vector.broadcast %cst_24 : f32 to vector<1x128xf32>
    %74 = arith.mulf %73, %65 : vector<1x128xf32>
    %75 = arith.subf %63, %74 : vector<1x128xf32>
    %cst_25 = arith.constant 5.000000e-01 : f32
    %76 = vector.broadcast %cst_25 : f32 to vector<1x128xf32>
    %77 = arith.mulf %76, %66 : vector<1x128xf32>
    %78 = arith.subf %64, %77 : vector<1x128xf32>
    %79 = arith.addf %75, %65 : vector<1x128xf32>
    %80 = arith.addf %78, %66 : vector<1x128xf32>
    %cst_26 = arith.constant 5.000000e-01 : f32
    %81 = vector.broadcast %cst_26 : f32 to vector<1x128xf32>
    %82 = arith.mulf %81, %69 : vector<1x128xf32>
    %83 = arith.subf %67, %82 : vector<1x128xf32>
    %cst_27 = arith.constant 5.000000e-01 : f32
    %84 = vector.broadcast %cst_27 : f32 to vector<1x128xf32>
    %85 = arith.mulf %84, %70 : vector<1x128xf32>
    %86 = arith.subf %68, %85 : vector<1x128xf32>
    %87 = arith.addf %83, %69 : vector<1x128xf32>
    %88 = arith.addf %86, %70 : vector<1x128xf32>
    %89 = arith.minimumf %79, %87 : vector<1x128xf32>
    %90 = arith.maximumf %75, %83 : vector<1x128xf32>
    %91 = arith.subf %89, %90 : vector<1x128xf32>
    %cst_28 = arith.constant 0.000000e+00 : f32
    %92 = vector.broadcast %cst_28 : f32 to vector<1x128xf32>
    %93 = arith.maximumf %91, %92 : vector<1x128xf32>
    %94 = arith.minimumf %80, %88 : vector<1x128xf32>
    %95 = arith.maximumf %78, %86 : vector<1x128xf32>
    %96 = arith.subf %94, %95 : vector<1x128xf32>
    %cst_29 = arith.constant 0.000000e+00 : f32
    %97 = vector.broadcast %cst_29 : f32 to vector<1x128xf32>
    %98 = arith.maximumf %96, %97 : vector<1x128xf32>
    %99 = arith.mulf %93, %98 : vector<1x128xf32>
    %100 = arith.subf %79, %75 : vector<1x128xf32>
    %101 = arith.subf %80, %78 : vector<1x128xf32>
    %102 = arith.mulf %100, %101 : vector<1x128xf32>
    %103 = arith.subf %87, %83 : vector<1x128xf32>
    %104 = arith.subf %88, %86 : vector<1x128xf32>
    %105 = arith.mulf %103, %104 : vector<1x128xf32>
    %106 = arith.addf %102, %105 : vector<1x128xf32>
    %107 = arith.subf %106, %99 : vector<1x128xf32>
    %cst_30 = arith.constant 9.99999996E-13 : f32
    %108 = vector.broadcast %cst_30 : f32 to vector<1x128xf32>
    %109 = arith.maximumf %107, %108 : vector<1x128xf32>
    %110 = arith.divf %99, %109 : vector<1x128xf32>
    %111 = arith.mulf %110, %72 : vector<1x128xf32>
    %112 = math.absf %71 : vector<1x128xf32>
    %cst_31 = arith.constant 0.000000e+00 : f32
    %113 = vector.broadcast %cst_31 : f32 to vector<1x128xf32>
    %114 = arith.subf %113, %112 : vector<1x128xf32>
    %115 = math.exp %114 : vector<1x128xf32>
    %cst_32 = arith.constant 1.000000e+00 : f32
    %116 = vector.broadcast %cst_32 : f32 to vector<1x128xf32>
    %117 = arith.addf %116, %115 : vector<1x128xf32>
    %118 = math.log %117 : vector<1x128xf32>
    %cst_33 = arith.constant 1.000000e+00 : f32
    %119 = vector.broadcast %cst_33 : f32 to vector<1x128xf32>
    %120 = arith.addf %119, %115 : vector<1x128xf32>
    %121 = tpu.reciprocal %120 {approx = true} : vector<1x128xf32> -> vector<1x128xf32>
    %cst_34 = arith.constant 0.000000e+00 : f32
    %122 = vector.broadcast %cst_34 : f32 to vector<1x128xf32>
    %123 = arith.cmpf oge, %71, %122 : vector<1x128xf32>
    %cst_35 = arith.constant 1.000000e+00 : f32
    %124 = vector.broadcast %cst_35 : f32 to vector<1x128xf32>
    %125 = arith.subf %124, %121 : vector<1x128xf32>
    %126 = arith.select %123, %121, %125 : vector<1x128xi1>, vector<1x128xf32>
    %cst_36 = arith.constant 0.000000e+00 : f32
    %127 = vector.broadcast %cst_36 : f32 to vector<1x128xf32>
    %128 = arith.maximumf %71, %127 : vector<1x128xf32>
    %129 = arith.addf %128, %118 : vector<1x128xf32>
    %130 = arith.mulf %71, %111 : vector<1x128xf32>
    %131 = arith.subf %129, %130 : vector<1x128xf32>
    %132 = arith.mulf %126, %126 : vector<1x128xf32>
    %cst_37 = arith.constant 0.000000e+00 : f32
    %133 = vector.broadcast %cst_37 : f32 to vector<1x128xf32>
    %134 = arith.cmpf ogt, %111, %133 : vector<1x128xf32>
    %135 = arith.subf %126, %111 : vector<1x128xf32>
    %136 = arith.mulf %131, %111 : vector<1x128xf32>
    %cst_38 = arith.constant 8.500000e-01 : f32
    %137 = vector.broadcast %cst_38 : f32 to vector<1x128xf32>
    %138 = arith.mulf %137, %132 : vector<1x128xf32>
    %139 = arith.mulf %129, %138 : vector<1x128xf32>
    %140 = arith.subf %136, %139 : vector<1x128xf32>
    %cst_39 = arith.constant 0.000000e+00 : f32
    %141 = vector.broadcast %cst_39 : f32 to vector<1x128xf32>
    %142 = arith.select %134, %140, %141 : vector<1x128xi1>, vector<1x128xf32>
    %143 = arith.mulf %135, %135 : vector<1x128xf32>
    %144 = arith.mulf %131, %143 : vector<1x128xf32>
    %145 = arith.mulf %129, %132 : vector<1x128xf32>
    %146 = arith.subf %144, %145 : vector<1x128xf32>
    %cst_40 = arith.constant 0.000000e+00 : f32
    %147 = vector.broadcast %cst_40 : f32 to vector<1x128xf32>
    %148 = arith.select %134, %146, %147 : vector<1x128xi1>, vector<1x128xf32>
    %149 = vector.shape_cast %29 : vector<4x128xf32> to vector<1x4x128xf32>
    %cst_41 = arith.constant dense<0.000000e+00> : vector<1xf32>
    %150 = vector.multi_reduction <add>, %149, %cst_41 [1, 2] : vector<1x4x128xf32> to vector<1xf32>
    %151 = vector.shape_cast %150 : vector<1xf32> to vector<1x1x1xf32>
    %152 = vector.extract %151[0, 0, 0] : f32 from vector<1x1x1xf32>
    %153 = vector.shape_cast %52 : vector<4x128xf32> to vector<1x4x128xf32>
    %cst_42 = arith.constant dense<0.000000e+00> : vector<1xf32>
    %154 = vector.multi_reduction <add>, %153, %cst_42 [1, 2] : vector<1x4x128xf32> to vector<1xf32>
    %155 = vector.shape_cast %154 : vector<1xf32> to vector<1x1x1xf32>
    %156 = vector.extract %155[0, 0, 0] : f32 from vector<1x1x1xf32>
    %157 = vector.shape_cast %58 : vector<4x128xf32> to vector<1x4x128xf32>
    %cst_43 = arith.constant dense<0.000000e+00> : vector<1xf32>
    %158 = vector.multi_reduction <add>, %157, %cst_43 [1, 2] : vector<1x4x128xf32> to vector<1xf32>
    %159 = vector.shape_cast %158 : vector<1xf32> to vector<1x1x1xf32>
    %160 = vector.extract %159[0, 0, 0] : f32 from vector<1x1x1xf32>
    %161 = vector.shape_cast %61 : vector<4x128xf32> to vector<1x4x128xf32>
    %cst_44 = arith.constant dense<0.000000e+00> : vector<1xf32>
    %162 = vector.multi_reduction <add>, %161, %cst_44 [1, 2] : vector<1x4x128xf32> to vector<1xf32>
    %163 = vector.shape_cast %162 : vector<1xf32> to vector<1x1x1xf32>
    %164 = vector.extract %163[0, 0, 0] : f32 from vector<1x1x1xf32>
    %165 = vector.shape_cast %142 : vector<1x128xf32> to vector<1x1x128xf32>
    %cst_45 = arith.constant dense<0.000000e+00> : vector<1xf32>
    %166 = vector.multi_reduction <add>, %165, %cst_45 [1, 2] : vector<1x1x128xf32> to vector<1xf32>
    %167 = vector.shape_cast %166 : vector<1xf32> to vector<1x1x1xf32>
    %168 = vector.extract %167[0, 0, 0] : f32 from vector<1x1x1xf32>
    %169 = vector.shape_cast %148 : vector<1x128xf32> to vector<1x1x128xf32>
    %cst_46 = arith.constant dense<0.000000e+00> : vector<1xf32>
    %170 = vector.multi_reduction <add>, %169, %cst_46 [1, 2] : vector<1x1x128xf32> to vector<1xf32>
    %171 = vector.shape_cast %170 : vector<1xf32> to vector<1x1x1xf32>
    %172 = vector.extract %171[0, 0, 0] : f32 from vector<1x1x1xf32>
    %cst_47 = arith.constant 8.500000e-01 : f32
    %173 = arith.mulf %cst_47, %152 : f32
    %174 = arith.addf %173, %168 : f32
    %cst_48 = arith.constant 0.001953125 : f32
    %175 = arith.mulf %174, %cst_48 : f32
    %c0_49 = arith.constant 0 : index
    %176 = memref.load %arg1[%c0_49] : memref<3xf32, #tpu.memory_space<smem>>
    memref.store %175, %arg1[%c0_49] : memref<3xf32, #tpu.memory_space<smem>>
    %177 = arith.addf %152, %172 : f32
    %cst_50 = arith.constant 0.001953125 : f32
    %178 = arith.mulf %177, %cst_50 : f32
    %c1 = arith.constant 1 : index
    %179 = memref.load %arg1[%c1] : memref<3xf32, #tpu.memory_space<smem>>
    memref.store %178, %arg1[%c1] : memref<3xf32, #tpu.memory_space<smem>>
    %cst_51 = arith.constant 0.001953125 : f32
    %180 = arith.mulf %156, %cst_51 : f32
    %cst_52 = arith.constant 1.000000e+00 : f32
    %181 = arith.maximumf %164, %cst_52 : f32
    %182 = arith.divf %160, %181 : f32
    %183 = arith.addf %180, %182 : f32
    %cst_53 = arith.constant 0.000000e+00 : f32
    %184 = arith.subf %cst_53, %183 : f32
    %c2 = arith.constant 2 : index
    %185 = memref.load %arg1[%c2] : memref<3xf32, #tpu.memory_space<smem>>
    memref.store %184, %arg1[%c2] : memref<3xf32, #tpu.memory_space<smem>>
    return
  }
}

</mosaic_0001>

<llo_original>
// kernel: tpu_custom_call.1
$region0: #{tpu_custom_call.1}
  #allocation0 [shape = 'u32[]', space=smem, size = 0x4, offset = 0x4, fixed_abs, tag = 'smem constant byte address 0x4 - core index']
  #allocation1 [shape = 'u32[144,128]{1,0:T(1,128)}', space=vmem, size = 0x12000, scoped, tag = 'internal scratch']
  %s0 = inlined_call_operand.hbm [shape: f32[18,128], index: 0, kind: input, shape index: {}]
  %s1 = inlined_call_operand.hbm [shape: f32[3], index: 1, kind: output, shape index: {}]
  %s2 = sld [smem:[#allocation0]]
  $region18: #{tpu_custom_call.1} parent=0
    _
  %s4 = ssub.s32 1, %s2
  %s5 = scalar_select 0, %s4, %s2
  $region1: #{tpu_custom_call.1} parent=0
    #allocation2 [shape = 'u8[12288]{0}', space=vmem, size = 0x3000, scoped, tag = 'input window, operand 0, single buffered']
    #allocation3 [shape = 's32[1]{0}', space=sflag, size = 0x4, scoped, tag = 'scoped memory for tpu_custom_call.1']
    #allocation4 [shape = 's32[1]{0}', space=sflag, size = 0x4, scoped, tag = 'scoped memory for tpu_custom_call.1']
    #allocation5 [shape = 'u8[512]{0}', space=smem, size = 0x200, scoped, tag = 'output window, operand 0, single buffered']
    %6 = vsyncpa [#allocation3], 0
    %7 = vsyncpa [#allocation4], 0
    // Predicated region
    $region2: #{tpu_custom_call.1} parent=1 // pred_check
      _
    $region3: #{tpu_custom_call.1} parent=1 // pred_check_branch
      %9 = sbr.rel (0) target = $region5
    $region4: #{tpu_custom_call.1} parent=1 // pred_region
      %s11 = ssub.s32 384, 384
      %12 = vsyncadd [#allocation3], %s11
      %s13 = sshll.u32 [#allocation2], 4
      %s14 = int_to_ptr.vmem [resolvable:$true] %s13
      %19 = dma.hbm_to_vmem [thread:$0]  %s0, 384, %s14, [#allocation3], 128, 128, 8
    $region5: #{tpu_custom_call.1} parent=1 // pred_fallthru
      _
    // Predicated region
    $region6: #{tpu_custom_call.1} parent=1 // pred_check
      _
    $region7: #{tpu_custom_call.1} parent=1 // pred_check_branch
      %21 = sbr.rel (0) target = $region9
    $region8: #{tpu_custom_call.1} parent=1 // pred_region
      %22 = dma.done [#allocation3], 384
    $region9: #{tpu_custom_call.1} parent=1 // pred_fallthru
      _
    %v23 = vld [vmem:[#allocation2] sm:$0xf]
    %v24 = vld [vmem:[#allocation2 + $0x4] sm:$0xf]
    %v25 = vand.u32 2147483647, %v23
    %v26 = vsub.f32 0.0, %v25
    %v27 = vmul.f32 %v26, 1.442695
    %v28 = vpow.pop %v27
    %v29 = vadd.f32 %v28, 1.0
    %v30 = vlog2.pop %v29
    %v31 = vmul.f32 %v30, 0.6931472
    %v32 = vrcp.pop %v29
    %vm33 = vcmp.ge.f32.partialorder %v23, 0.0
    %v34 = vsub.f32 1.0, %v32
    %v35 = vsel %vm33, %v32, %v34
    %v36 = vmin.f32 %v23, 0.0
    %v37 = vsub.f32 %v36, %v31
    %v38 = vmax.f32 %v23, 0.0
    %v39 = vsub.f32 0.0, %v38
    %v40 = vsub.f32 %v39, %v31
    %v41 = vadd.f32 %v38, %v31
    %v42 = vmul.f32 %v35, %v35
    %v43 = vmul.f32 %v41, %v42
    %vm44 = vcmp.eq.f32.partialorder %v24, 1.0
    %v45 = vmax.f32 %v35, 1e-06
    %v46 = vmin.f32 %v45, 1.0
    %v47 = vmax.f32 %v37, -13.815511
    %v48 = vmin.f32 %v47, 0.0
    %v49 = vmax.f32 %v40, -13.815511
    %v50 = vmin.f32 %v49, 0.0
    %v51 = vsub.f32 1.0, %v24
    %v52 = vmul.f32 %v51, %v51
    %v53 = vmul.f32 %v52, %v52
    %v54 = vmul.f32 %v46, %v46
    %v55 = vmul.f32 %v53, %v54
    %v56 = vmul.f32 %v55, %v50
    %v57 = vsel %vm44, 0.0, %v56
    %v58 = vsub.f32 1.0, %v46
    %v59 = vmul.f32 %v58, %v58
    %v60 = vmul.f32 %v59, %v48
    %v61 = vsel %vm44, %v60, 0.0
    %v62 = vsel %vm44, 1.0, 0.0
    %v63 = vld [vmem:[#allocation2 + $0x8] sm:$0xff]
    %v64 = vld [vmem:[#allocation2 + $0x10] sm:$0x3]
    %v65 = vmul.f32 %v63, 0.5
    %v67 = vrot.slane %v65, 2
    %v69 = vsub.f32 %v63, %v67
    %v71 = vrot.slane %v63, 2
    %v73 = vadd.f32 %v69, %v71
    %v75 = vrot.slane %v73, 4
    %v77 = vmin.f32 %v73, %v75
    %v79 = vrot.slane %v69, 4
    %v81 = vmax.f32 %v69, %v79
    %v82 = vsub.f32 %v77, %v81
    %v83 = vmax.f32 %v82, 0.0
    %v85 = vrot.slane %v83, 1
    %v87 = vmul.f32 %v83, %v85
    %v88 = vsub.f32 %v73, %v69
    %v90 = vrot.slane %v88, 1
    %v92 = vmul.f32 %v88, %v90
    %v94 = vrot.slane %v92, 4
    %v96 = vadd.f32 %v92, %v94
    %v97 = vsub.f32 %v96, %v87
    %v98 = vmax.f32 %v97, 1e-12
    %v99 = vrcp.pop %v98
    %v100 = vmul.f32 %v87, %v99
    %v102 = vrot.slane %v64, 1
    %v104 = vmul.f32 %v100, %v102
    %v105 = vand.u32 2147483647, %v64
    %v106 = vsub.f32 0.0, %v105
    %v107 = vmul.f32 %v106, 1.442695
    %v108 = vpow.pop %v107
    %v109 = vadd.f32 %v108, 1.0
    %v110 = vlog2.pop %v109
    %v111 = vmul.f32 %v110, 0.6931472
    %v112 = vrcp.pop %v109
    %vm113 = vcmp.ge.f32.partialorder %v64, 0.0
    %v114 = vsub.f32 1.0, %v112
    %v115 = vsel %vm113, %v112, %v114
    %v116 = vmax.f32 %v64, 0.0
    %v117 = vadd.f32 %v116, %v111
    %v118 = vmul.f32 %v64, %v104
    %v119 = vsub.f32 %v117, %v118
    %v120 = vmul.f32 %v115, %v115
    %vm121 = vcmp.gt.f32.partialorder %v104, 0.0
    %v122 = vsub.f32 %v115, %v104
    %v123 = vmul.f32 %v119, %v104
    %v124 = vmul.f32 %v120, 0.85
    %v125 = vmul.f32 %v117, %v124
    %v126 = vsub.f32 %v123, %v125
    %v127 = vsel %vm121, %v126, 0.0
    %v128 = vmul.f32 %v122, %v122
    %v129 = vmul.f32 %v119, %v128
    %v130 = vmul.f32 %v117, %v120
    %v131 = vsub.f32 %v129, %v130
    %v132 = vsel %vm121, %v131, 0.0
    %vm133 = vcmask 1043456
    %v134 = vsel %vm133, %v43, 0.0
    %135 = vadd.xlane.f32.xlu0 %v134
    %v136 = vpop.xlane.xlu0 %135
    %v137 = vrot.slane %v136, 4
    %v138 = vadd.f32 %v136, %v137
    %v139 = vrot.slane %v138, 2
    %v140 = vadd.f32 %v138, %v139
    %v141 = vrot.slane %v140, 1
    %v142 = vadd.f32 %v140, %v141
    %s143 = vtos %v142
    %v144 = vsel %vm133, %v57, 0.0
    %145 = vadd.xlane.f32.xlu0 %v144
    %v146 = vpop.xlane.xlu0 %145
    %v147 = vrot.slane %v146, 4
    %v148 = vadd.f32 %v146, %v147
    %v149 = vrot.slane %v148, 2
    %v150 = vadd.f32 %v148, %v149
    %v151 = vrot.slane %v150, 1
    %v152 = vadd.f32 %v150, %v151
    %s153 = vtos %v152
    %v154 = vsel %vm133, %v61, 0.0
    %155 = vadd.xlane.f32.xlu0 %v154
    %v156 = vpop.xlane.xlu0 %155
    %v157 = vrot.slane %v156, 4
    %v158 = vadd.f32 %v156, %v157
    %v159 = vrot.slane %v158, 2
    %v160 = vadd.f32 %v158, %v159
    %v161 = vrot.slane %v160, 1
    %v162 = vadd.f32 %v160, %v161
    %s163 = vtos %v162
    %v164 = vsel %vm133, %v62, 0.0
    %165 = vadd.xlane.f32.xlu0 %v164
    %v166 = vpop.xlane.xlu0 %165
    %v167 = vrot.slane %v166, 4
    %v168 = vadd.f32 %v166, %v167
    %v169 = vrot.slane %v168, 2
    %v170 = vadd.f32 %v168, %v169
    %v171 = vrot.slane %v170, 1
    %v172 = vadd.f32 %v170, %v171
    %s173 = vtos %v172
    %vm174 = vcmask 1040384
    %v175 = vsel %vm174, %v127, 0.0
    %176 = vadd.xlane.f32.xlu0 %v175
    %v177 = vpop.xlane.xlu0 %176
    %v178 = vrot.slane %v177, 4
    %v179 = vadd.f32 %v177, %v178
    %v180 = vrot.slane %v179, 2
    %v181 = vadd.f32 %v179, %v180
    %v182 = vrot.slane %v181, 1
    %v183 = vadd.f32 %v181, %v182
    %s184 = vtos %v183
    %v185 = vsel %vm174, %v132, 0.0
    %186 = vadd.xlane.f32.xlu0 %v185
    %v187 = vpop.xlane.xlu0 %186
    %v188 = vrot.slane %v187, 4
    %v189 = vadd.f32 %v187, %v188
    %v190 = vrot.slane %v189, 2
    %v191 = vadd.f32 %v189, %v190
    %v192 = vrot.slane %v191, 1
    %v193 = vadd.f32 %v191, %v192
    %s194 = vtos %v193
    %s195 = smul.f32 %s143, 0.85
    %s196 = sadd.f32 %s195, %s184
    %s197 = smul.f32 %s196, 0.001953125
    %s198 = scalar_lea.smem [#allocation5], 0
    %199 = sst [smem:[%s198]] %s197
    %s200 = sadd.f32 %s143, %s194
    %s201 = smul.f32 %s200, 0.001953125
    %s202 = scalar_lea.smem [#allocation5], 1
    %203 = sst [smem:[%s202]] %s201
    %s204 = smul.f32 %s153, 0.001953125
    %s205 = smax.f32 %s173, 1.0
    %v206 = vstv %s205
    %v207 = vrcp.pop %v206
    %s208 = vtos %v207
    %s209 = smul.f32 %s163, %s208
    %s210 = sadd.f32 %s204, %s209
    %s211 = ssub.f32 0.0, %s210
    %s212 = scalar_lea.smem [#allocation5], 2
    %213 = sst [smem:[%s212]] %s211
    // Predicated region
    $region10: #{tpu_custom_call.1} parent=1 // pred_check
      _
    $region11: #{tpu_custom_call.1} parent=1 // pred_check_branch
      %215 = sbr.rel (0) target = $region13
    $region12: #{tpu_custom_call.1} parent=1 // pred_region
      %s217 = ssub.s32 16, 16
      %218 = vsyncadd [#allocation4], %s217
      %221 = dma.smem_to_hbm [#allocation5], 16, %s1, [#allocation4]
    $region13: #{tpu_custom_call.1} parent=1 // pred_fallthru
      _
    // Predicated region
    $region14: #{tpu_custom_call.1} parent=1 // pred_check
      _
    $region15: #{tpu_custom_call.1} parent=1 // pred_check_branch
      %223 = sbr.rel (0) target = $region17
    $region16: #{tpu_custom_call.1} parent=1 // pred_region
      %224 = dma.done [#allocation4], 16
    $region17: #{tpu_custom_call.1} parent=1 // pred_fallthru
      _
    %225 = sfence
    %226 = vsyncpa [#allocation3], 1
    %227 = vsyncpa [#allocation4], 1

</llo_original>
